<compile_context>
chip_gen: v5e
topology: v5e:2x2
jax: 0.10.0
libtpu: 0.0.40
codegen_flags: <defaults>
</compile_context>

<pallas_src>
import functools
from collections import deque

import jax
import jax.numpy as jnp
from jax.experimental import pallas as pl
from jax.experimental.pallas import tpu as pltpu


def _round_up(v, m):
    return (v + m - 1) // m * m


# ----------------------------- Pallas kernel ------------------------------

def _fused_heads_kernel(x_ref, w_ref, b_ref, lin_ref, relu_ref, scl_ref, *, scale):
    # x: [BM, K] f32 resident in VMEM once per grid step.
    x = x_ref[...]

    # Elementwise heads (VPU), lane-dense stores (last dim = K = 1024).
    relu_ref[...] = jnp.maximum(x, 0.0).astype(relu_ref.dtype)
    scl_ref[...] = (x * scale).astype(scl_ref.dtype)

    # Linear head (MXU): bf16 x bf16 -> f32 accumulate, [BM, K] @ [K, Npad].
    acc = jnp.dot(x.astype(jnp.bfloat16), w_ref[...],
                  preferred_element_type=jnp.float32)
    lin_ref[...] = (acc + b_ref[...]).astype(lin_ref.dtype)


# ----------------------------- wrapper (glue) ------------------------------

def fused_heads_pallas(x2d, w_pad, b_pad, *, scale, tm=512):
    """One fused pallas_call producing (linear, relu, scaled) from one x read.

    x2d:   [M, K] f32 (no padding required; M may be < 8).
    w_pad: [K, N] bf16 with N % 128 == 0 (padded columns are zero).
    b_pad: [1, N] f32.
    """
    M, K = x2d.shape
    _, N = w_pad.shape

    kernel = functools.partial(_fused_heads_kernel, scale=scale)

    if M <= tm:
        # Single block: one DMA of x, one launch. Best for tiny/latency-bound
        # sizes; the size-1 grid makes dimension_semantics a no-op.
        grid = (1,)
        blk_m = M
        dim_sem = ("arbitrary",)
    else:
        # M-tiled path for real batches: weight/bias blocks stay resident
        # (constant index_map), x/output blocks stream with double-buffering,
        # and the 'parallel' axis can shard across TensorCores (v7x).
        grid = (pl.cdiv(M, tm),)
        blk_m = tm
        dim_sem = ("parallel",)

    flops = 2 * M * K * N + 2 * M * K                       # matmul + relu + scale
    bytes_accessed = (4 * M * K          # x (f32)
                      + 2 * K * N        # w (bf16)
                      + 4 * N            # b (f32)
                      + 4 * M * N        # linear out
                      + 2 * 4 * M * K)   # relu + scaled out

    # Explicit VMEM budget only when the tiled double-buffered footprint may
    # exceed the smallest default scoped limit (v5e: 16 MiB). Re-derived from
    # block sizes so it stays valid on v7x's smaller (64 MiB) VMEM.
    per_block_bytes = (4 * blk_m * K        # x block
                       + 2 * K * N          # weight block (bf16)
                       + 4 * N              # bias block
                       + 4 * blk_m * N      # linear block
                       + 2 * 4 * blk_m * K)  # relu + scaled blocks
    vmem_needed = 2 * per_block_bytes        # double buffering
    cp_kwargs = dict(dimension_semantics=dim_sem)
    if vmem_needed > 12 * 1024 * 1024:
        cp_kwargs["vmem_limit_bytes"] = min(
            int(vmem_needed * 1.5) + (1 << 20), 100 * 1024 * 1024)

    return pl.pallas_call(
        kernel,
        out_shape=(
            jax.ShapeDtypeStruct((M, N), jnp.float32),   # linear (padded N)
            jax.ShapeDtypeStruct((M, K), jnp.float32),   # relu
            jax.ShapeDtypeStruct((M, K), jnp.float32),   # scaled
        ),
        grid=grid,
        in_specs=[
            pl.BlockSpec((blk_m, K), lambda i: (i, 0)),
            pl.BlockSpec((K, N), lambda i: (0, 0)),
            pl.BlockSpec((1, N), lambda i: (0, 0)),
        ],
        out_specs=(
            pl.BlockSpec((blk_m, N), lambda i: (i, 0)),
            pl.BlockSpec((blk_m, K), lambda i: (i, 0)),
            pl.BlockSpec((blk_m, K), lambda i: (i, 0)),
        ),
        compiler_params=pltpu.CompilerParams(**cp_kwargs),
        cost_estimate=pl.CostEstimate(
            flops=flops, transcendentals=0, bytes_accessed=bytes_accessed),
    )(x2d, w_pad, b_pad)


# ------------------------- Flatten module semantics -------------------------

def flatten(inputs):
    """BFS flatten of nested list/tuple/dict structures into a list of arrays.

    Mirrors torchprofile's `flatten` (deque-based BFS, dict iterates values in
    insertion order), with jax arrays playing the role of torch.Tensor.
    """
    queue = deque([inputs])
    outputs = []
    while queue:
        x = queue.popleft()
        if isinstance(x, (list, tuple)):
            queue.extend(x)
        elif isinstance(x, dict):
            queue.extend(x.values())
        elif isinstance(x, jnp.ndarray):
            outputs.append(x)
    return outputs


class SyntheticModel:
    """Small deterministic wrapped model producing NESTED outputs.

    Returns (linear_head, {"relu": relu(x), "scaled": 2*x}) so the Flatten
    wrapper has real nested structure to flatten. All three heads come from
    one fused Pallas kernel.
    """

    def __init__(self, in_features, out_features, key):
        kw, kb = jax.random.split(key)
        self.in_features = in_features
        self.out_features = out_features
        self.w = (jax.random.normal(kw, (in_features, out_features), jnp.float32)
                  * (1.0 / jnp.sqrt(in_features)))
        self.b = jax.random.normal(kb, (out_features,), jnp.float32) * 0.01

        # Pad N once to 128 so the MXU result tile / weight block are
        # lane-aligned (padded columns are zero), and store the weight as
        # bf16: it is the dominant HBM traffic of this kernel.
        n_pad = _round_up(out_features, 128)
        w_pad = (jnp.zeros((in_features, n_pad), jnp.float32)
                 .at[:, :out_features].set(self.w))
        self.w_pad = w_pad.astype(jnp.bfloat16)
        self.b_pad = (jnp.zeros((1, n_pad), jnp.float32)
                      .at[:, :out_features].set(self.b))

    def __call__(self, x):
        B, C, H, W = x.shape
        K = C * H * W
        assert K == self.in_features

        # Pure-glue reshape (contiguous -> bitcast); no padding, no row slices.
        x2d = x.reshape(B, K)

        lin_p, relu_p, scl_p = fused_heads_pallas(
            x2d, self.w_pad, self.b_pad, scale=2.0)

        lin = lin_p[:, :self.out_features]      # one tiny lane slice (32/128)
        relu = relu_p.reshape(B, C, H, W)       # free bitcast back to NCHW
        scaled = scl_p.reshape(B, C, H, W)
        return (lin, {"relu": relu, "scaled": scaled})


class Flatten:
    """JAX/Pallas equivalent of the PyTorch `Flatten` wrapper module."""

    def __init__(self, model):
        self.model = model

    def __call__(self, *args, **kwargs):
        outputs = self.model(*args, **kwargs)
        return flatten(outputs)


# ---------------------------------- main ----------------------------------

if __name__ == "__main__":
    key = jax.random.PRNGKey(0)
    kx, kp = jax.random.split(key)

    B, C, H, W = 2, 4, 16, 16
    hidden = 32
    x = jax.random.normal(kx, (B, C, H, W), jnp.float32)   # layout: NCHW

    model = SyntheticModel(C * H * W, hidden, kp)
    wrapped = Flatten(model)

    outs = wrapped(x)
    for o in outs:
        jax.block_until_ready(o)

    # sanity checks against pure-JAX reference
    assert len(outs) == 3
    assert outs[0].shape == (B, hidden)
    ref_lin = x.reshape(B, -1) @ model.w + model.b
    # bf16 weight in the MXU path -> looser tolerance for the linear head.
    assert jnp.allclose(outs[0], ref_lin, rtol=2e-2, atol=2e-2), "linear mismatch"
    assert jnp.allclose(outs[1], jnp.maximum(x, 0.0)), "relu mismatch"
    assert jnp.allclose(outs[2], 2.0 * x), "scale mismatch"

    # Also exercise the M-tiled ("parallel" grid, resident-weight) path.
    M_big = 48
    xb = jax.random.normal(jax.random.PRNGKey(1), (M_big, C * H * W), jnp.float32)
    lin_b, relu_b, scl_b = fused_heads_pallas(
        xb, model.w_pad, model.b_pad, scale=2.0, tm=16)
    jax.block_until_ready(lin_b)
    ref_b = xb @ model.w + model.b
    assert jnp.allclose(lin_b[:, :hidden], ref_b, rtol=2e-2, atol=2e-2), "tiled linear mismatch"
    assert jnp.allclose(relu_b, jnp.maximum(xb, 0.0)), "tiled relu mismatch"
    assert jnp.allclose(scl_b, 2.0 * xb), "tiled scale mismatch"

    print("KERNEL_OK")
</pallas_src>

<mosaic_0001>
module attributes {stable_mosaic.version = 11 : i64} {
  func.func @_fused_heads_kernel(%arg0: i32, %arg1: memref<2x1024xf32, #tpu.memory_space<vmem>>, %arg2: memref<1024x128xbf16, #tpu.memory_space<vmem>>, %arg3: memref<1x128xf32, #tpu.memory_space<vmem>>, %arg4: memref<2x128xf32, #tpu.memory_space<vmem>>, %arg5: memref<2x1024xf32, #tpu.memory_space<vmem>>, %arg6: memref<2x1024xf32, #tpu.memory_space<vmem>>) attributes {dimension_semantics = [#tpu.dimension_semantics<arbitrary>], iteration_bounds = array<i64: 1>, scalar_prefetch = 0 : i64, scratch_operands = 0 : i64, tpu.core_type = #tpu.core_type<tc>, window_params = [{transform_indices = @transform_0, window_bounds = array<i64: 2, 1024>}, {pipeline_mode = #tpu.pipeline_mode<synchronous>, transform_indices = @transform_1, window_bounds = array<i64: 1024, 128>}, {pipeline_mode = #tpu.pipeline_mode<synchronous>, transform_indices = @transform_2, window_bounds = array<i64: 1, 128>}, {transform_indices = @transform_3, window_bounds = array<i64: 2, 128>}, {transform_indices = @transform_4, window_bounds = array<i64: 2, 1024>}, {transform_indices = @transform_5, window_bounds = array<i64: 2, 1024>}]} {
    %c0 = arith.constant 0 : index
    %c0_0 = arith.constant 0 : index
    %0 = vector.load %arg1[%c0, %c0_0] : memref<2x1024xf32, #tpu.memory_space<vmem>>, vector<2x1024xf32>
    %cst = arith.constant 0.000000e+00 : f32
    %1 = vector.broadcast %cst : f32 to vector<2x1024xf32>
    %2 = arith.maximumf %0, %1 : vector<2x1024xf32>
    %c0_1 = arith.constant 0 : index
    %c0_2 = arith.constant 0 : index
    %3 = vector.load %arg5[%c0_1, %c0_2] : memref<2x1024xf32, #tpu.memory_space<vmem>>, vector<2x1024xf32>
    tpu.vector_store %arg5[%c0_1, %c0_2], %2 {strides = array<i32>} : memref<2x1024xf32, #tpu.memory_space<vmem>>, vector<2x1024xf32>,
    %cst_3 = arith.constant 2.000000e+00 : f32
    %4 = vector.broadcast %cst_3 : f32 to vector<2x1024xf32>
    %5 = arith.mulf %0, %4 : vector<2x1024xf32>
    %c0_4 = arith.constant 0 : index
    %c0_5 = arith.constant 0 : index
    %6 = vector.load %arg6[%c0_4, %c0_5] : memref<2x1024xf32, #tpu.memory_space<vmem>>, vector<2x1024xf32>
    tpu.vector_store %arg6[%c0_4, %c0_5], %5 {strides = array<i32>} : memref<2x1024xf32, #tpu.memory_space<vmem>>, vector<2x1024xf32>,
    %7 = arith.truncf %0 : vector<2x1024xf32> to vector<2x1024xbf16>
    %c0_6 = arith.constant 0 : index
    %c0_7 = arith.constant 0 : index
    %8 = vector.load %arg2[%c0_6, %c0_7] : memref<1024x128xbf16, #tpu.memory_space<vmem>>, vector<1024x128xbf16>
    %cst_8 = arith.constant dense<0.000000e+00> : vector<2x128xf32>
    %9 = tpu.matmul %7, %8, %cst_8 {dimension_numbers = #tpu.dot_dimension_numbers<[1], [0], [0], [1], [0, 0, 1, 1], [], []>} : vector<2x1024xbf16>, vector<1024x128xbf16>, vector<2x128xf32> -> vector<2x128xf32>
    %c0_9 = arith.constant 0 : index
    %c0_10 = arith.constant 0 : index
    %10 = vector.load %arg3[%c0_9, %c0_10] : memref<1x128xf32, #tpu.memory_space<vmem>>, vector<1x128xf32>
    %11 = vector.broadcast %10 : vector<1x128xf32> to vector<2x128xf32>
    %12 = arith.addf %9, %11 : vector<2x128xf32>
    %c0_11 = arith.constant 0 : index
    %c0_12 = arith.constant 0 : index
    %13 = vector.load %arg4[%c0_11, %c0_12] : memref<2x128xf32, #tpu.memory_space<vmem>>, vector<2x128xf32>
    tpu.vector_store %arg4[%c0_11, %c0_12], %12 {strides = array<i32>} : memref<2x128xf32, #tpu.memory_space<vmem>>, vector<2x128xf32>,
    return
  }
  func.func @transform_0(%arg0: i32) -> (i32, i32) {
    %c0_i32 = arith.constant 0 : i32
    %c0_i32_0 = arith.constant 0 : i32
    return %arg0, %c0_i32 : i32, i32
  }
  func.func @transform_1(%arg0: i32) -> (i32, i32) {
    %c0_i32 = arith.constant 0 : i32
    %c0_i32_0 = arith.constant 0 : i32
    %c0_i32_1 = arith.constant 0 : i32
    return %c0_i32, %c0_i32_0 : i32, i32
  }
  func.func @transform_2(%arg0: i32) -> (i32, i32) {
    %c0_i32 = arith.constant 0 : i32
    %c0_i32_0 = arith.constant 0 : i32
    %c0_i32_1 = arith.constant 0 : i32
    return %c0_i32, %c0_i32_0 : i32, i32
  }
  func.func @transform_3(%arg0: i32) -> (i32, i32) {
    %c0_i32 = arith.constant 0 : i32
    %c0_i32_0 = arith.constant 0 : i32
    return %arg0, %c0_i32 : i32, i32
  }
  func.func @transform_4(%arg0: i32) -> (i32, i32) {
    %c0_i32 = arith.constant 0 : i32
    %c0_i32_0 = arith.constant 0 : i32
    return %arg0, %c0_i32 : i32, i32
  }
  func.func @transform_5(%arg0: i32) -> (i32, i32) {
    %c0_i32 = arith.constant 0 : i32
    %c0_i32_0 = arith.constant 0 : i32
    return %arg0, %c0_i32 : i32, i32
  }
}

</mosaic_0001>

<llo_original>
// kernel: tpu_custom_call.1
$region0: #{tpu_custom_call.1}
  #allocation0 [shape = 'u32[]', space=smem, size = 0x4, offset = 0x4, fixed_abs, tag = 'smem constant byte address 0x4 - core index']
  #allocation1 [shape = 'u32[72,128]{1,0:T(1,128)}', space=vmem, size = 0x9000, scoped, tag = 'internal scratch']
  %s0 = inlined_call_operand.hbm [shape: f32[2,1024], index: 0, kind: input, shape index: {}]
  %s1 = inlined_call_operand.hbm [shape: bf16[1024,128], index: 1, kind: input, shape index: {}]
  %s2 = inlined_call_operand.vmem [shape: f32[1,128], index: 2, kind: input, shape index: {}]
  %s3 = inlined_call_operand.hbm [shape: f32[2,128], index: 3, kind: output, shape index: {0}]
  %s4 = inlined_call_operand.hbm [shape: f32[2,1024], index: 4, kind: output, shape index: {1}]
  %s5 = inlined_call_operand.hbm [shape: f32[2,1024], index: 5, kind: output, shape index: {2}]
  %6 = xla_tuple %s3, %s4, %s5
  %s7 = sld [smem:[#allocation0]]
  $region46: #{tpu_custom_call.1} parent=0
    _
  %s9 = ssub.s32 1, %s7
  %s10 = scalar_select 0, %s9, %s7
  $region1: #{tpu_custom_call.1} parent=0
    #allocation2 [shape = 'u8[8192]{0}', space=vmem, size = 0x2000, scoped, tag = 'input window, operand 0, single buffered']
    #allocation3 [shape = 's32[1]{0}', space=sflag, size = 0x4, scoped, tag = 'scoped memory for tpu_custom_call.1']
    #allocation4 [shape = 's32[1]{0}', space=sflag, size = 0x4, scoped, tag = 'scoped memory for tpu_custom_call.1']
    #allocation5 [shape = 'u8[262144]{0}', space=vmem, size = 0x40000, scoped, tag = 'input window, operand 1, single buffered']
    #allocation6 [shape = 's32[1]{0}', space=sflag, size = 0x4, scoped, tag = 'scoped memory for tpu_custom_call.1']
    #allocation7 [shape = 'u8[1024]{0}', space=vmem, size = 0x400, scoped, tag = 'output window, operand 0, single buffered']
    #allocation8 [shape = 'u8[8192]{0}', space=vmem, size = 0x2000, scoped, tag = 'output window, operand 1, single buffered']
    #allocation9 [shape = 's32[1]{0}', space=sflag, size = 0x4, scoped, tag = 'scoped memory for tpu_custom_call.1']
    #allocation10 [shape = 'u8[8192]{0}', space=vmem, size = 0x2000, scoped, tag = 'output window, operand 2, single buffered']
    %11 = vsyncpa [#allocation3], 0
    %12 = vsyncpa [#allocation6], 0
    %13 = vsyncpa [#allocation4], 0
    %14 = vsyncpa [#allocation9], 0
    // Predicated region
    $region2: #{tpu_custom_call.1} parent=1 // pred_check
      _
    $region3: #{tpu_custom_call.1} parent=1 // pred_check_branch
      %16 = sbr.rel (0) target = $region5
    $region4: #{tpu_custom_call.1} parent=1 // pred_region
      %18 = vsyncadd [#allocation3], 0
      %s20 = sshll.u32 %s0, 4
      %s21 = int_to_ptr.hbm [resolvable:$true] %s20
      %s22 = sshll.u32 [#allocation2], 4
      %s23 = int_to_ptr.vmem [resolvable:$true] %s22
      %25 = dma.hbm_to_vmem [thread:$0]  %s21, 256, %s23, [#allocation3]
    $region5: #{tpu_custom_call.1} parent=1 // pred_fallthru
      _
    // Predicated region
    $region6: #{tpu_custom_call.1} parent=1 // pred_check
      _
    $region7: #{tpu_custom_call.1} parent=1 // pred_check_branch
      %27 = sbr.rel (0) target = $region9
    $region8: #{tpu_custom_call.1} parent=1 // pred_region
      %29 = vsyncadd [#allocation6], 0
      %s30 = sshll.u32 %s1, 4
      %s31 = int_to_ptr.hbm [resolvable:$true] %s30
      %s32 = sshll.u32 [#allocation5], 4
      %s33 = int_to_ptr.vmem [resolvable:$true] %s32
      %38 = dma.hbm_to_vmem [thread:$0]  %s31, 8192, %s33, [#allocation6], 64, 64, 4
    $region9: #{tpu_custom_call.1} parent=1 // pred_fallthru
      _
    // Predicated region
    $region10: #{tpu_custom_call.1} parent=1 // pred_check
      _
    $region11: #{tpu_custom_call.1} parent=1 // pred_check_branch
      %40 = sbr.rel (0) target = $region13
    $region12: #{tpu_custom_call.1} parent=1 // pred_region
      _
    $region13: #{tpu_custom_call.1} parent=1 // pred_fallthru
      _
    // Predicated region
    $region14: #{tpu_custom_call.1} parent=1 // pred_check
      _
    $region15: #{tpu_custom_call.1} parent=1 // pred_check_branch
      %42 = sbr.rel (0) target = $region17
    $region16: #{tpu_custom_call.1} parent=1 // pred_region
      %44 = dma.done [#allocation3], 256
    $region17: #{tpu_custom_call.1} parent=1 // pred_fallthru
      _
    // Predicated region
    $region18: #{tpu_custom_call.1} parent=1 // pred_check
      _
    $region19: #{tpu_custom_call.1} parent=1 // pred_check_branch
      %46 = sbr.rel (0) target = $region21
    $region20: #{tpu_custom_call.1} parent=1 // pred_region
      %48 = dma.done [#allocation6], 8192
    $region21: #{tpu_custom_call.1} parent=1 // pred_fallthru
      _
    %v49 = vld [vmem:[#allocation2] sm:$0xff]
    %v50 = vld [vmem:[#allocation2 + $0x8] sm:$0xff]
    %v51 = vmax.f32 %v49, 0.0
    %v52 = vmax.f32 %v50, 0.0
    %53 = vst [vmem:[#allocation8] sm:$0xff] %v51
    %54 = vst [vmem:[#allocation8 + $0x8] sm:$0xff] %v52
    %v55 = vmul.f32 %v49, 2.0
    %v56 = vmul.f32 %v50, 2.0
    %57 = vst [vmem:[#allocation10] sm:$0xff] %v55
    %58 = vst [vmem:[#allocation10 + $0x8] sm:$0xff] %v56
    %61 = vst [vmem:[#allocation1] ss:$4 sm:$0xff] %v49
    %s62 = scalar_lea.vmem [#allocation1], 32
    %63 = vst [vmem:[%s62] ss:$4 sm:$0xff] %v50
    %v64 = vld.sshfl [vmem:[#allocation1] sm:$0xff pattern:$0x73625140]
    %v65 = vld.sshfl [vmem:[#allocation1 + $0x8] sm:$0xff pattern:$0x73625140]
    %v66 = vld.sshfl [vmem:[#allocation1 + $0x10] sm:$0xff pattern:$0x73625140]
    %v67 = vld.sshfl [vmem:[#allocation1 + $0x18] sm:$0xff pattern:$0x73625140]
    %v68 = vld.sshfl [vmem:[#allocation1 + $0x20] sm:$0xff pattern:$0x73625140]
    %v69 = vld.sshfl [vmem:[#allocation1 + $0x28] sm:$0xff pattern:$0x73625140]
    %v70 = vld.sshfl [vmem:[#allocation1 + $0x30] sm:$0xff pattern:$0x73625140]
    %v71 = vld.sshfl [vmem:[#allocation1 + $0x38] sm:$0xff pattern:$0x73625140]
    %v80 = vpack.c.bf16 %v64, %v64
    %v81 = vpack.c.bf16 %v65, %v65
    %v82 = vpack.c.bf16 %v66, %v66
    %v83 = vpack.c.bf16 %v67, %v67
    %v84 = vpack.c.bf16 %v68, %v68
    %v85 = vpack.c.bf16 %v69, %v69
    %v86 = vpack.c.bf16 %v70, %v70
    %v87 = vpack.c.bf16 %v71, %v71
    %v88 = vld [vmem:[#allocation5] sm:$0xf]
    %v89 = vld [vmem:[#allocation5 + $0x4] sm:$0xf]
    %v90 = vld [vmem:[#allocation5 + $0x8] sm:$0xf]
    %v91 = vld [vmem:[#allocation5 + $0xc] sm:$0xf]
    %v92 = vld [vmem:[#allocation5 + $0x10] sm:$0xf]
    %v93 = vld [vmem:[#allocation5 + $0x14] sm:$0xf]
    %v94 = vld [vmem:[#allocation5 + $0x18] sm:$0xf]
    %v95 = vld [vmem:[#allocation5 + $0x1c] sm:$0xf]
    %v96 = vld [vmem:[#allocation5 + $0x20] sm:$0xf]
    %v97 = vld [vmem:[#allocation5 + $0x24] sm:$0xf]
    %v98 = vld [vmem:[#allocation5 + $0x28] sm:$0xf]
    %v99 = vld [vmem:[#allocation5 + $0x2c] sm:$0xf]
    %v100 = vld [vmem:[#allocation5 + $0x30] sm:$0xf]
    %v101 = vld [vmem:[#allocation5 + $0x34] sm:$0xf]
    %v102 = vld [vmem:[#allocation5 + $0x38] sm:$0xf]
    %v103 = vld [vmem:[#allocation5 + $0x3c] sm:$0xf]
    %v104 = vld [vmem:[#allocation5 + $0x40] sm:$0xf]
    %v105 = vld [vmem:[#allocation5 + $0x44] sm:$0xf]
    %v106 = vld [vmem:[#allocation5 + $0x48] sm:$0xf]
    %v107 = vld [vmem:[#allocation5 + $0x4c] sm:$0xf]
    %v108 = vld [vmem:[#allocation5 + $0x50] sm:$0xf]
    %v109 = vld [vmem:[#allocation5 + $0x54] sm:$0xf]
    %v110 = vld [vmem:[#allocation5 + $0x58] sm:$0xf]
    %v111 = vld [vmem:[#allocation5 + $0x5c] sm:$0xf]
    %v112 = vld [vmem:[#allocation5 + $0x60] sm:$0xf]
    %v113 = vld [vmem:[#allocation5 + $0x64] sm:$0xf]
    %v114 = vld [vmem:[#allocation5 + $0x68] sm:$0xf]
    %v115 = vld [vmem:[#allocation5 + $0x6c] sm:$0xf]
    %v116 = vld [vmem:[#allocation5 + $0x70] sm:$0xf]
    %v117 = vld [vmem:[#allocation5 + $0x74] sm:$0xf]
    %v118 = vld [vmem:[#allocation5 + $0x78] sm:$0xf]
    %v119 = vld [vmem:[#allocation5 + $0x7c] sm:$0xf]
    %v120 = vld [vmem:[#allocation5 + $0x80] sm:$0xf]
    %v121 = vld [vmem:[#allocation5 + $0x84] sm:$0xf]
    %v122 = vld [vmem:[#allocation5 + $0x88] sm:$0xf]
    %v123 = vld [vmem:[#allocation5 + $0x8c] sm:$0xf]
    %v124 = vld [vmem:[#allocation5 + $0x90] sm:$0xf]
    %v125 = vld [vmem:[#allocation5 + $0x94] sm:$0xf]
    %v126 = vld [vmem:[#allocation5 + $0x98] sm:$0xf]
    %v127 = vld [vmem:[#allocation5 + $0x9c] sm:$0xf]
    %v128 = vld [vmem:[#allocation5 + $0xa0] sm:$0xf]
    %v129 = vld [vmem:[#allocation5 + $0xa4] sm:$0xf]
    %v130 = vld [vmem:[#allocation5 + $0xa8] sm:$0xf]
    %v131 = vld [vmem:[#allocation5 + $0xac] sm:$0xf]
    %v132 = vld [vmem:[#allocation5 + $0xb0] sm:$0xf]
    %v133 = vld [vmem:[#allocation5 + $0xb4] sm:$0xf]
    %v134 = vld [vmem:[#allocation5 + $0xb8] sm:$0xf]
    %v135 = vld [vmem:[#allocation5 + $0xbc] sm:$0xf]
    %v136 = vld [vmem:[#allocation5 + $0xc0] sm:$0xf]
    %v137 = vld [vmem:[#allocation5 + $0xc4] sm:$0xf]
    %v138 = vld [vmem:[#allocation5 + $0xc8] sm:$0xf]
    %v139 = vld [vmem:[#allocation5 + $0xcc] sm:$0xf]
    %v140 = vld [vmem:[#allocation5 + $0xd0] sm:$0xf]
    %v141 = vld [vmem:[#allocation5 + $0xd4] sm:$0xf]
    %v142 = vld [vmem:[#allocation5 + $0xd8] sm:$0xf]
    %v143 = vld [vmem:[#allocation5 + $0xdc] sm:$0xf]
    %v144 = vld [vmem:[#allocation5 + $0xe0] sm:$0xf]
    %v145 = vld [vmem:[#allocation5 + $0xe4] sm:$0xf]
    %v146 = vld [vmem:[#allocation5 + $0xe8] sm:$0xf]
    %v147 = vld [vmem:[#allocation5 + $0xec] sm:$0xf]
    %v148 = vld [vmem:[#allocation5 + $0xf0] sm:$0xf]
    %v149 = vld [vmem:[#allocation5 + $0xf4] sm:$0xf]
    %v150 = vld [vmem:[#allocation5 + $0xf8] sm:$0xf]
    %v151 = vld [vmem:[#allocation5 + $0xfc] sm:$0xf]
    %v152 = vld [vmem:[#allocation5 + $0x100] sm:$0xf]
    %v153 = vld [vmem:[#allocation5 + $0x104] sm:$0xf]
    %v154 = vld [vmem:[#allocation5 + $0x108] sm:$0xf]
    %v155 = vld [vmem:[#allocation5 + $0x10c] sm:$0xf]
    %v156 = vld [vmem:[#allocation5 + $0x110] sm:$0xf]
    %v157 = vld [vmem:[#allocation5 + $0x114] sm:$0xf]
    %v158 = vld [vmem:[#allocation5 + $0x118] sm:$0xf]
    %v159 = vld [vmem:[#allocation5 + $0x11c] sm:$0xf]
    %v160 = vld [vmem:[#allocation5 + $0x120] sm:$0xf]
    %v161 = vld [vmem:[#allocation5 + $0x124] sm:$0xf]
    %v162 = vld [vmem:[#allocation5 + $0x128] sm:$0xf]
    %v163 = vld [vmem:[#allocation5 + $0x12c] sm:$0xf]
    %v164 = vld [vmem:[#allocation5 + $0x130] sm:$0xf]
    %v165 = vld [vmem:[#allocation5 + $0x134] sm:$0xf]
    %v166 = vld [vmem:[#allocation5 + $0x138] sm:$0xf]
    %v167 = vld [vmem:[#allocation5 + $0x13c] sm:$0xf]
    %v168 = vld [vmem:[#allocation5 + $0x140] sm:$0xf]
    %v169 = vld [vmem:[#allocation5 + $0x144] sm:$0xf]
    %v170 = vld [vmem:[#allocation5 + $0x148] sm:$0xf]
    %v171 = vld [vmem:[#allocation5 + $0x14c] sm:$0xf]
    %v172 = vld [vmem:[#allocation5 + $0x150] sm:$0xf]
    %v173 = vld [vmem:[#allocation5 + $0x154] sm:$0xf]
    %v174 = vld [vmem:[#allocation5 + $0x158] sm:$0xf]
    %v175 = vld [vmem:[#allocation5 + $0x15c] sm:$0xf]
    %v176 = vld [vmem:[#allocation5 + $0x160] sm:$0xf]
    %v177 = vld [vmem:[#allocation5 + $0x164] sm:$0xf]
    %v178 = vld [vmem:[#allocation5 + $0x168] sm:$0xf]
    %v179 = vld [vmem:[#allocation5 + $0x16c] sm:$0xf]
    %v180 = vld [vmem:[#allocation5 + $0x170] sm:$0xf]
    %v181 = vld [vmem:[#allocation5 + $0x174] sm:$0xf]
    %v182 = vld [vmem:[#allocation5 + $0x178] sm:$0xf]
    %v183 = vld [vmem:[#allocation5 + $0x17c] sm:$0xf]
    %v184 = vld [vmem:[#allocation5 + $0x180] sm:$0xf]
    %v185 = vld [vmem:[#allocation5 + $0x184] sm:$0xf]
    %v186 = vld [vmem:[#allocation5 + $0x188] sm:$0xf]
    %v187 = vld [vmem:[#allocation5 + $0x18c] sm:$0xf]
    %v188 = vld [vmem:[#allocation5 + $0x190] sm:$0xf]
    %v189 = vld [vmem:[#allocation5 + $0x194] sm:$0xf]
    %v190 = vld [vmem:[#allocation5 + $0x198] sm:$0xf]
    %v191 = vld [vmem:[#allocation5 + $0x19c] sm:$0xf]
    %v192 = vld [vmem:[#allocation5 + $0x1a0] sm:$0xf]
    %v193 = vld [vmem:[#allocation5 + $0x1a4] sm:$0xf]
    %v194 = vld [vmem:[#allocation5 + $0x1a8] sm:$0xf]
    %v195 = vld [vmem:[#allocation5 + $0x1ac] sm:$0xf]
    %v196 = vld [vmem:[#allocation5 + $0x1b0] sm:$0xf]
    %v197 = vld [vmem:[#allocation5 + $0x1b4] sm:$0xf]
    %v198 = vld [vmem:[#allocation5 + $0x1b8] sm:$0xf]
    %v199 = vld [vmem:[#allocation5 + $0x1bc] sm:$0xf]
    %v200 = vld [vmem:[#allocation5 + $0x1c0] sm:$0xf]
    %v201 = vld [vmem:[#allocation5 + $0x1c4] sm:$0xf]
    %v202 = vld [vmem:[#allocation5 + $0x1c8] sm:$0xf]
    %v203 = vld [vmem:[#allocation5 + $0x1cc] sm:$0xf]
    %v204 = vld [vmem:[#allocation5 + $0x1d0] sm:$0xf]
    %v205 = vld [vmem:[#allocation5 + $0x1d4] sm:$0xf]
    %v206 = vld [vmem:[#allocation5 + $0x1d8] sm:$0xf]
    %v207 = vld [vmem:[#allocation5 + $0x1dc] sm:$0xf]
    %v208 = vld [vmem:[#allocation5 + $0x1e0] sm:$0xf]
    %v209 = vld [vmem:[#allocation5 + $0x1e4] sm:$0xf]
    %v210 = vld [vmem:[#allocation5 + $0x1e8] sm:$0xf]
    %v211 = vld [vmem:[#allocation5 + $0x1ec] sm:$0xf]
    %v212 = vld [vmem:[#allocation5 + $0x1f0] sm:$0xf]
    %v213 = vld [vmem:[#allocation5 + $0x1f4] sm:$0xf]
    %v214 = vld [vmem:[#allocation5 + $0x1f8] sm:$0xf]
    %v215 = vld [vmem:[#allocation5 + $0x1fc] sm:$0xf]
    %v216 = vld [vmem:[%s2] sm:$0x1]
    %v218 = vperm.slane %v216, 0
    %v348 = vunpack.c.l.b16 %v88
    %v349 = vunpack.c.l.b16 %v89
    %v350 = vunpack.c.l.b16 %v90
    %v351 = vunpack.c.l.b16 %v91
    %v352 = vunpack.c.l.b16 %v92
    %v353 = vunpack.c.l.b16 %v93
    %v354 = vunpack.c.l.b16 %v94
    %v355 = vunpack.c.l.b16 %v95
    %v356 = vunpack.c.l.b16 %v96
    %v357 = vunpack.c.l.b16 %v97
    %v358 = vunpack.c.l.b16 %v98
    %v359 = vunpack.c.l.b16 %v99
    %v360 = vunpack.c.l.b16 %v100
    %v361 = vunpack.c.l.b16 %v101
    %v362 = vunpack.c.l.b16 %v102
    %v363 = vunpack.c.l.b16 %v103
    %v364 = vunpack.c.l.b16 %v104
    %v365 = vunpack.c.l.b16 %v105
    %v366 = vunpack.c.l.b16 %v106
    %v367 = vunpack.c.l.b16 %v107
    %v368 = vunpack.c.l.b16 %v108
    %v369 = vunpack.c.l.b16 %v109
    %v370 = vunpack.c.l.b16 %v110
    %v371 = vunpack.c.l.b16 %v111
    %v372 = vunpack.c.l.b16 %v112
    %v373 = vunpack.c.l.b16 %v113
    %v374 = vunpack.c.l.b16 %v114
    %v375 = vunpack.c.l.b16 %v115
    %v376 = vunpack.c.l.b16 %v116
    %v377 = vunpack.c.l.b16 %v117
    %v378 = vunpack.c.l.b16 %v118
    %v379 = vunpack.c.l.b16 %v119
    %v380 = vunpack.c.l.b16 %v120
    %v381 = vunpack.c.l.b16 %v121
    %v382 = vunpack.c.l.b16 %v122
    %v383 = vunpack.c.l.b16 %v123
    %v384 = vunpack.c.l.b16 %v124
    %v385 = vunpack.c.l.b16 %v125
    %v386 = vunpack.c.l.b16 %v126
    %v387 = vunpack.c.l.b16 %v127
    %v388 = vunpack.c.l.b16 %v128
    %v389 = vunpack.c.l.b16 %v129
    %v390 = vunpack.c.l.b16 %v130
    %v391 = vunpack.c.l.b16 %v131
    %v392 = vunpack.c.l.b16 %v132
    %v393 = vunpack.c.l.b16 %v133
    %v394 = vunpack.c.l.b16 %v134
    %v395 = vunpack.c.l.b16 %v135
    %v396 = vunpack.c.l.b16 %v136
    %v397 = vunpack.c.l.b16 %v137
    %v398 = vunpack.c.l.b16 %v138
    %v399 = vunpack.c.l.b16 %v139
    %v400 = vunpack.c.l.b16 %v140
    %v401 = vunpack.c.l.b16 %v141
    %v402 = vunpack.c.l.b16 %v142
    %v403 = vunpack.c.l.b16 %v143
    %v404 = vunpack.c.l.b16 %v144
    %v405 = vunpack.c.l.b16 %v145
    %v406 = vunpack.c.l.b16 %v146
    %v407 = vunpack.c.l.b16 %v147
    %v408 = vunpack.c.l.b16 %v148
    %v409 = vunpack.c.l.b16 %v149
    %v410 = vunpack.c.l.b16 %v150
    %v411 = vunpack.c.l.b16 %v151
    %v412 = vunpack.c.l.b16 %v152
    %v413 = vunpack.c.l.b16 %v153
    %v414 = vunpack.c.l.b16 %v154
    %v415 = vunpack.c.l.b16 %v155
    %v416 = vunpack.c.l.b16 %v156
    %v417 = vunpack.c.l.b16 %v157
    %v418 = vunpack.c.l.b16 %v158
    %v419 = vunpack.c.l.b16 %v159
    %v420 = vunpack.c.l.b16 %v160
    %v421 = vunpack.c.l.b16 %v161
    %v422 = vunpack.c.l.b16 %v162
    %v423 = vunpack.c.l.b16 %v163
    %v424 = vunpack.c.l.b16 %v164
    %v425 = vunpack.c.l.b16 %v165
    %v426 = vunpack.c.l.b16 %v166
    %v427 = vunpack.c.l.b16 %v167
    %v428 = vunpack.c.l.b16 %v168
    %v429 = vunpack.c.l.b16 %v169
    %v430 = vunpack.c.l.b16 %v170
    %v431 = vunpack.c.l.b16 %v171
    %v432 = vunpack.c.l.b16 %v172
    %v433 = vunpack.c.l.b16 %v173
    %v434 = vunpack.c.l.b16 %v174
    %v435 = vunpack.c.l.b16 %v175
    %v436 = vunpack.c.l.b16 %v176
    %v437 = vunpack.c.l.b16 %v177
    %v438 = vunpack.c.l.b16 %v178
    %v439 = vunpack.c.l.b16 %v179
    %v440 = vunpack.c.l.b16 %v180
    %v441 = vunpack.c.l.b16 %v181
    %v442 = vunpack.c.l.b16 %v182
    %v443 = vunpack.c.l.b16 %v183
    %v444 = vunpack.c.l.b16 %v184
    %v445 = vunpack.c.l.b16 %v185
    %v446 = vunpack.c.l.b16 %v186
    %v447 = vunpack.c.l.b16 %v187
    %v448 = vunpack.c.l.b16 %v188
    %v449 = vunpack.c.l.b16 %v189
    %v450 = vunpack.c.l.b16 %v190
    %v451 = vunpack.c.l.b16 %v191
    %v452 = vunpack.c.l.b16 %v192
    %v453 = vunpack.c.l.b16 %v193
    %v454 = vunpack.c.l.b16 %v194
    %v455 = vunpack.c.l.b16 %v195
    %v456 = vunpack.c.l.b16 %v196
    %v457 = vunpack.c.l.b16 %v197
    %v458 = vunpack.c.l.b16 %v198
    %v459 = vunpack.c.l.b16 %v199
    %v460 = vunpack.c.l.b16 %v200
    %v461 = vunpack.c.l.b16 %v201
    %v462 = vunpack.c.l.b16 %v202
    %v463 = vunpack.c.l.b16 %v203
    %v464 = vunpack.c.l.b16 %v204
    %v465 = vunpack.c.l.b16 %v205
    %v466 = vunpack.c.l.b16 %v206
    %v467 = vunpack.c.l.b16 %v207
    %v468 = vunpack.c.l.b16 %v208
    %v469 = vunpack.c.l.b16 %v209
    %v470 = vunpack.c.l.b16 %v210
    %v471 = vunpack.c.l.b16 %v211
    %v472 = vunpack.c.l.b16 %v212
    %v473 = vunpack.c.l.b16 %v213
    %v474 = vunpack.c.l.b16 %v214
    %v475 = vunpack.c.l.b16 %v215
    %v476 = vpack.c.b16 %v349, %v348
    %v477 = vpack.c.b16 %v351, %v350
    %v478 = vpack.c.b16 %v353, %v352
    %v479 = vpack.c.b16 %v355, %v354
    %v480 = vpack.c.b16 %v357, %v356
    %v481 = vpack.c.b16 %v359, %v358
    %v482 = vpack.c.b16 %v361, %v360
    %v483 = vpack.c.b16 %v363, %v362
    %v484 = vpack.c.b16 %v365, %v364
    %v485 = vpack.c.b16 %v367, %v366
    %v486 = vpack.c.b16 %v369, %v368
    %v487 = vpack.c.b16 %v371, %v370
    %v488 = vpack.c.b16 %v373, %v372
    %v489 = vpack.c.b16 %v375, %v374
    %v490 = vpack.c.b16 %v377, %v376
    %v491 = vpack.c.b16 %v379, %v378
    %v492 = vpack.c.b16 %v381, %v380
    %v493 = vpack.c.b16 %v383, %v382
    %v494 = vpack.c.b16 %v385, %v384
    %v495 = vpack.c.b16 %v387, %v386
    %v496 = vpack.c.b16 %v389, %v388
    %v497 = vpack.c.b16 %v391, %v390
    %v498 = vpack.c.b16 %v393, %v392
    %v499 = vpack.c.b16 %v395, %v394
    %v500 = vpack.c.b16 %v397, %v396
    %v501 = vpack.c.b16 %v399, %v398
    %v502 = vpack.c.b16 %v401, %v400
    %v503 = vpack.c.b16 %v403, %v402
    %v504 = vpack.c.b16 %v405, %v404
    %v505 = vpack.c.b16 %v407, %v406
    %v506 = vpack.c.b16 %v409, %v408
    %v507 = vpack.c.b16 %v411, %v410
    %v508 = vpack.c.b16 %v413, %v412
    %v509 = vpack.c.b16 %v415, %v414
    %v510 = vpack.c.b16 %v417, %v416
    %v511 = vpack.c.b16 %v419, %v418
    %v512 = vpack.c.b16 %v421, %v420
    %v513 = vpack.c.b16 %v423, %v422
    %v514 = vpack.c.b16 %v425, %v424
    %v515 = vpack.c.b16 %v427, %v426
    %v516 = vpack.c.b16 %v429, %v428
    %v517 = vpack.c.b16 %v431, %v430
    %v518 = vpack.c.b16 %v433, %v432
    %v519 = vpack.c.b16 %v435, %v434
    %v520 = vpack.c.b16 %v437, %v436
    %v521 = vpack.c.b16 %v439, %v438
    %v522 = vpack.c.b16 %v441, %v440
    %v523 = vpack.c.b16 %v443, %v442
    %v524 = vpack.c.b16 %v445, %v444
    %v525 = vpack.c.b16 %v447, %v446
    %v526 = vpack.c.b16 %v449, %v448
    %v527 = vpack.c.b16 %v451, %v450
    %v528 = vpack.c.b16 %v453, %v452
    %v529 = vpack.c.b16 %v455, %v454
    %v530 = vpack.c.b16 %v457, %v456
    %v531 = vpack.c.b16 %v459, %v458
    %v532 = vpack.c.b16 %v461, %v460
    %v533 = vpack.c.b16 %v463, %v462
    %v534 = vpack.c.b16 %v465, %v464
    %v535 = vpack.c.b16 %v467, %v466
    %v536 = vpack.c.b16 %v469, %v468
    %v537 = vpack.c.b16 %v471, %v470
    %v538 = vpack.c.b16 %v473, %v472
    %v539 = vpack.c.b16 %v475, %v474
    %604 = vmatpush.bf16.msra.mxu0 %v483
    %605 = vmatpush.bf16.msra.mxu0 %v482
    %606 = vmatpush.bf16.msra.mxu0 %v481
    %607 = vmatpush.bf16.msra.mxu0 %v480
    %608 = vmatpush.bf16.msra.mxu0 %v479
    %609 = vmatpush.bf16.msra.mxu0 %v478
    %610 = vmatpush.bf16.msra.mxu0 %v477
    %611 = vmatpush.bf16.msra.mxu0 %v476
    %612 = vmatmul.bf16.gmra.mxu0 %v80
    %v613 = vpop.f32.mrf.mxu0
    %v614 = vadd.f32 %v218, %v613
    %v615 = vpop.f32.mrf.mxu0
    %616 = vdwg.mxu0
    %617 = vmatpush.bf16.msra.mxu0 %v491
    %618 = vmatpush.bf16.msra.mxu0 %v490
    %619 = vmatpush.bf16.msra.mxu0 %v489
    %620 = vmatpush.bf16.msra.mxu0 %v488
    %621 = vmatpush.bf16.msra.mxu0 %v487
    %622 = vmatpush.bf16.msra.mxu0 %v486
    %623 = vmatpush.bf16.msra.mxu0 %v485
    %624 = vmatpush.bf16.msra.mxu0 %v484
    %625 = vmatmul.bf16.gmra.mxu0 %v81
    %v626 = vpop.f32.mrf.mxu0
    %v627 = vadd.f32 %v614, %v626
    %v628 = vpop.f32.mrf.mxu0
    %629 = vdwg.mxu0
    %630 = vmatpush.bf16.msra.mxu0 %v499
    %631 = vmatpush.bf16.msra.mxu0 %v498
    %632 = vmatpush.bf16.msra.mxu0 %v497
    %633 = vmatpush.bf16.msra.mxu0 %v496
    %634 = vmatpush.bf16.msra.mxu0 %v495
    %635 = vmatpush.bf16.msra.mxu0 %v494
    %636 = vmatpush.bf16.msra.mxu0 %v493
    %637 = vmatpush.bf16.msra.mxu0 %v492
    %638 = vmatmul.bf16.gmra.mxu0 %v82
    %v639 = vpop.f32.mrf.mxu0
    %v640 = vadd.f32 %v627, %v639
    %v641 = vpop.f32.mrf.mxu0
    %642 = vdwg.mxu0
    %643 = vmatpush.bf16.msra.mxu0 %v507
    %644 = vmatpush.bf16.msra.mxu0 %v506
    %645 = vmatpush.bf16.msra.mxu0 %v505
    %646 = vmatpush.bf16.msra.mxu0 %v504
    %647 = vmatpush.bf16.msra.mxu0 %v503
    %648 = vmatpush.bf16.msra.mxu0 %v502
    %649 = vmatpush.bf16.msra.mxu0 %v501
    %650 = vmatpush.bf16.msra.mxu0 %v500
    %651 = vmatmul.bf16.gmra.mxu0 %v83
    %v652 = vpop.f32.mrf.mxu0
    %v653 = vadd.f32 %v640, %v652
    %v654 = vpop.f32.mrf.mxu0
    %655 = vdwg.mxu0
    %656 = vmatpush.bf16.msra.mxu0 %v515
    %657 = vmatpush.bf16.msra.mxu0 %v514
    %658 = vmatpush.bf16.msra.mxu0 %v513
    %659 = vmatpush.bf16.msra.mxu0 %v512
    %660 = vmatpush.bf16.msra.mxu0 %v511
    %661 = vmatpush.bf16.msra.mxu0 %v510
    %662 = vmatpush.bf16.msra.mxu0 %v509
    %663 = vmatpush.bf16.msra.mxu0 %v508
    %664 = vmatmul.bf16.gmra.mxu0 %v84
    %v665 = vpop.f32.mrf.mxu0
    %v666 = vadd.f32 %v653, %v665
    %v667 = vpop.f32.mrf.mxu0
    %668 = vdwg.mxu0
    %669 = vmatpush.bf16.msra.mxu0 %v523
    %670 = vmatpush.bf16.msra.mxu0 %v522
    %671 = vmatpush.bf16.msra.mxu0 %v521
    %672 = vmatpush.bf16.msra.mxu0 %v520
    %673 = vmatpush.bf16.msra.mxu0 %v519
    %674 = vmatpush.bf16.msra.mxu0 %v518
    %675 = vmatpush.bf16.msra.mxu0 %v517
    %676 = vmatpush.bf16.msra.mxu0 %v516
    %677 = vmatmul.bf16.gmra.mxu0 %v85
    %v678 = vpop.f32.mrf.mxu0
    %v679 = vadd.f32 %v666, %v678
    %v680 = vpop.f32.mrf.mxu0
    %681 = vdwg.mxu0
    %682 = vmatpush.bf16.msra.mxu0 %v531
    %683 = vmatpush.bf16.msra.mxu0 %v530
    %684 = vmatpush.bf16.msra.mxu0 %v529
    %685 = vmatpush.bf16.msra.mxu0 %v528
    %686 = vmatpush.bf16.msra.mxu0 %v527
    %687 = vmatpush.bf16.msra.mxu0 %v526
    %688 = vmatpush.bf16.msra.mxu0 %v525
    %689 = vmatpush.bf16.msra.mxu0 %v524
    %690 = vmatmul.bf16.gmra.mxu0 %v86
    %v691 = vpop.f32.mrf.mxu0
    %v692 = vadd.f32 %v679, %v691
    %v693 = vpop.f32.mrf.mxu0
    %694 = vdwg.mxu0
    %695 = vmatpush.bf16.msra.mxu0 %v539
    %696 = vmatpush.bf16.msra.mxu0 %v538
    %697 = vmatpush.bf16.msra.mxu0 %v537
    %698 = vmatpush.bf16.msra.mxu0 %v536
    %699 = vmatpush.bf16.msra.mxu0 %v535
    %700 = vmatpush.bf16.msra.mxu0 %v534
    %701 = vmatpush.bf16.msra.mxu0 %v533
    %702 = vmatpush.bf16.msra.mxu0 %v532
    %703 = vmatmul.bf16.gmra.mxu0 %v87
    %v704 = vpop.f32.mrf.mxu0
    %v705 = vadd.f32 %v692, %v704
    %v706 = vpop.f32.mrf.mxu0
    %707 = vdwg.mxu0
    %708 = vst [vmem:[#allocation7] sm:$0x3] %v705
    // Predicated region
    $region22: #{tpu_custom_call.1} parent=1 // pred_check
      _
    $region23: #{tpu_custom_call.1} parent=1 // pred_check_branch
      %710 = sbr.rel (0) target = $region25
    $region24: #{tpu_custom_call.1} parent=1 // pred_region
      %712 = vsyncadd [#allocation4], 0
      %s714 = sshll.u32 [#allocation7], 4
      %s715 = int_to_ptr.vmem [resolvable:$true] %s714
      %s716 = sshll.u32 %s3, 4
      %s717 = int_to_ptr.hbm [resolvable:$true] %s716
      %719 = dma.vmem_to_hbm [thread:$0]  %s715, 32, %s717, [#allocation4]
    $region25: #{tpu_custom_call.1} parent=1 // pred_fallthru
      _
    // Predicated region
    $region26: #{tpu_custom_call.1} parent=1 // pred_check
      _
    $region27: #{tpu_custom_call.1} parent=1 // pred_check_branch
      %721 = sbr.rel (0) target = $region29
    $region28: #{tpu_custom_call.1} parent=1 // pred_region
      %723 = vsyncadd [#allocation9], 0
      %s725 = sshll.u32 [#allocation8], 4
      %s726 = int_to_ptr.vmem [resolvable:$true] %s725
      %s727 = sshll.u32 %s4, 4
      %s728 = int_to_ptr.hbm [resolvable:$true] %s727
      %730 = dma.vmem_to_hbm [thread:$0]  %s726, 256, %s728, [#allocation9]
    $region29: #{tpu_custom_call.1} parent=1 // pred_fallthru
      _
    // Predicated region
    $region30: #{tpu_custom_call.1} parent=1 // pred_check
      _
    $region31: #{tpu_custom_call.1} parent=1 // pred_check_branch
      %732 = sbr.rel (0) target = $region33
    $region32: #{tpu_custom_call.1} parent=1 // pred_region
      %734 = vsyncadd [#allocation9], 0
      %s736 = sshll.u32 [#allocation10], 4
      %s737 = int_to_ptr.vmem [resolvable:$true] %s736
      %s738 = sshll.u32 %s5, 4
      %s739 = int_to_ptr.hbm [resolvable:$true] %s738
      %741 = dma.vmem_to_hbm [thread:$0]  %s737, 256, %s739, [#allocation9]
    $region33: #{tpu_custom_call.1} parent=1 // pred_fallthru
      _
    // Predicated region
    $region34: #{tpu_custom_call.1} parent=1 // pred_check
      _
    $region35: #{tpu_custom_call.1} parent=1 // pred_check_branch
      %743 = sbr.rel (0) target = $region37
    $region36: #{tpu_custom_call.1} parent=1 // pred_region
      %745 = dma.done [#allocation4], 32
    $region37: #{tpu_custom_call.1} parent=1 // pred_fallthru
      _
    // Predicated region
    $region38: #{tpu_custom_call.1} parent=1 // pred_check
      _
    $region39: #{tpu_custom_call.1} parent=1 // pred_check_branch
      %747 = sbr.rel (0) target = $region41
    $region40: #{tpu_custom_call.1} parent=1 // pred_region
      %749 = dma.done [#allocation9], 256
    $region41: #{tpu_custom_call.1} parent=1 // pred_fallthru
      _
    // Predicated region
    $region42: #{tpu_custom_call.1} parent=1 // pred_check
      _
    $region43: #{tpu_custom_call.1} parent=1 // pred_check_branch
      %751 = sbr.rel (0) target = $region45
    $region44: #{tpu_custom_call.1} parent=1 // pred_region
      %753 = dma.done [#allocation9], 256
    $region45: #{tpu_custom_call.1} parent=1 // pred_fallthru
      _
    %754 = vsyncpa [#allocation3], 1
    %755 = vsyncpa [#allocation6], 1
    %756 = vsyncpa [#allocation4], 1
    %757 = vsyncpa [#allocation9], 1

</llo_original>
